<compile_context>
chip_gen: v7x
topology: tpu7x:2x2x1
jax: 0.10.0
libtpu: 0.0.40
codegen_flags: <defaults>
</compile_context>

<pallas_src>
import functools

import numpy as np
import jax
import jax.numpy as jnp
from jax import lax
from jax.experimental import pallas as pl
from jax.experimental.pallas import tpu as pltpu


# ---------------------------------------------------------------------------
# VMEM budgeting (generation aware: 128 MiB VMEM on v5e/v6e, 64 MiB on v7x)
# ---------------------------------------------------------------------------
def _vmem_capacity_bytes():
    try:
        cap = int(pltpu.get_tpu_info().vmem_capacity_bytes)
        if cap > 0:
            return cap
    except Exception:
        pass
    return 64 * 1024 * 1024          # conservative fallback (v7x-sized)


def _budgets():
    cap = _vmem_capacity_bytes()
    # One (input + output) block.  Pallas double-buffers each, plus the small
    # resident constant operand -> comfortably inside the scoped limit below.
    block_target = max(1 << 20, min(8 << 20, cap // 16))   # 8 MiB v5e/v6e, 4 MiB v7x
    vmem_limit = max(32 << 20, min(64 << 20, cap // 2))    # 64 MiB v5e/v6e, 32 MiB v7x
    return block_target, vmem_limit


def _round_up(x, m):
    return ((x + m - 1) // m) * m


def _pick_row_tile(n_rows, bytes_per_row, target_bytes):
    """Multiple-of-8 row tile.  The grid uses pl.cdiv, so the tile need NOT
    divide n_rows (boundary blocks are masked by Pallas) -> no full-array
    fallback that could exceed the scoped VMEM limit."""
    cap = max(8, (target_bytes // max(bytes_per_row, 1)) // 8 * 8)
    if n_rows > 16:
        # At least two grid steps: DMA/compute pipelining + 2-TC sharding (v7x).
        cap = min(cap, max(8, (((n_rows + 1) // 2) // 8) * 8))
    return min(cap, _round_up(n_rows, 8))


def _pick_spatial_tile(hw, bytes_per_col, target_bytes, force_split=False):
    """Multiple-of-128 lane tile (or full hw when small); pl.cdiv grid."""
    if hw <= 512 and not force_split:
        return hw
    cap = max(128, (target_bytes // max(bytes_per_col, 1)) // 128 * 128)
    if force_split and hw > 256:
        cap = min(cap, max(128, (((hw + 1) // 2) // 128) * 128))
    return min(cap, _round_up(hw, 128))


# ---------------------------------------------------------------------------
# mode='nearest' (module default): s-times nearest-neighbor upsample, NCHW
# ---------------------------------------------------------------------------
def _expansion_half(w, s, dtype):
    """E0 (W, s*W): E0[j, s*j+dj] = 1.  x_row @ E0 width-interleaves one image
    row; the s height replicas are identical for nearest, so the kernel stores
    the product s times instead of multiplying by an s-fold wider matrix
    (halves MXU FLOPs for s=2 and the resident E buffer)."""
    e = np.zeros((w, s * w), dtype=np.float32)
    j = np.arange(w)
    for dj in range(s):
        e[j, s * j + dj] = 1.0
    return jnp.asarray(e, dtype=dtype)


def _expansion_grouped(w, s, g, dtype):
    """Block-diagonal E (g*W, g*s*s*W): output column (hl, di, j, dj) takes
    input column (hl, j).  Used when s*s*W < 128 so the store stays lane-dense
    (>=128 lanes) instead of masked vst.msk; FLOPs are negligible there."""
    e = np.zeros((g * w, g * s * s * w), dtype=np.float32)
    j = np.arange(w)
    for hl in range(g):
        for di in range(s):
            for dj in range(s):
                e[hl * w + j, hl * s * s * w + di * s * w + s * j + dj] = 1.0
    return jnp.asarray(e, dtype=dtype)


def _pick_group(h, w, s):
    if s * s * w >= 128:
        return 1                     # lanes already dense without grouping
    for g in range(2, h + 1):
        if h % g == 0 and g * s * s * w >= 128:
            # keep E small enough to stay resident; otherwise accept masked stores
            return g if g * s * s * w <= 2048 else 1
    return 1


def _nearest_kernel(x_ref, e_ref, o_ref, *, copies, copy_width):
    # (TR, K) @ (K, e_cols) on the MXU.  E is 0/1 with exactly one nonzero per
    # column, so HIGHEST keeps the op bit-exact for f32 inputs.  (Mosaic's dot
    # lowering supports only DEFAULT / HIGHEST; DEFAULT would round x to bf16.)
    y = jnp.dot(x_ref[...], e_ref[...],
                precision=lax.Precision.HIGHEST,
                preferred_element_type=jnp.float32).astype(o_ref.dtype)
    if copies == 1:
        o_ref[...] = y
    else:
        for di in range(copies):     # identical height replicas (nearest)
            o_ref[:, di * copy_width:(di + 1) * copy_width] = y


def nearest_upsample(x, scale=2):
    """Equivalent of nn.Upsample(scale_factor=scale, mode='nearest'), NCHW."""
    s = int(scale)
    if s == 1:
        return x
    B, C, H, W = x.shape
    itemsize = x.dtype.itemsize
    g = _pick_group(H, W, s)

    R = B * C * (H // g)
    in_cols = g * W
    out_cols = g * s * s * W
    xf = x.reshape(R, in_cols)                        # free contiguous reshape

    if g == 1:
        e = _expansion_half(W, s, x.dtype)            # (W, s*W); store s copies
        copies, copy_width = s, s * W
    else:
        e = _expansion_grouped(W, s, g, x.dtype)      # (g*W, g*s*s*W)
        copies, copy_width = 1, out_cols

    block_target, vmem_limit = _budgets()
    TR = _pick_row_tile(R, (in_cols + out_cols) * itemsize, block_target)
    grid = (pl.cdiv(R, TR),)

    cost = pl.CostEstimate(
        flops=int(2 * R * in_cols * e.shape[1]),
        transcendentals=0,
        bytes_accessed=int(itemsize * (R * (in_cols + out_cols) + e.size)),
    )

    kernel = functools.partial(_nearest_kernel, copies=copies,
                               copy_width=copy_width)
    out = pl.pallas_call(
        kernel,
        out_shape=jax.ShapeDtypeStruct((R, out_cols), x.dtype),
        grid=grid,
        in_specs=[
            pl.BlockSpec((TR, in_cols), lambda t: (t, 0)),
            # Constant operand: index (0, 0) every step -> fetched once and
            # kept resident.  (pl.Buffered(1) would also drop its second
            # buffer, but E is only KBs; skipped for lowering safety.)
            pl.BlockSpec(e.shape, lambda t: (0, 0)),
        ],
        out_specs=pl.BlockSpec((TR, out_cols), lambda t: (t, 0)),
        compiler_params=pltpu.CompilerParams(
            dimension_semantics=("parallel",),
            vmem_limit_bytes=int(vmem_limit)),
        cost_estimate=cost,
    )(xf, e)

    # Free contiguous reshape: columns are already ordered (hl, di, j, dj).
    return out.reshape(B, C, s * H, s * W)


# ---------------------------------------------------------------------------
# mode='conv': ConvTranspose2d(C, C, kernel_size=2, stride=2, pad=0, bias=False)
# k == stride == 2 -> no overlap, so the transposed conv is a channel-mixing
# matmul per pixel:  z[(co,di,dj), (i,j)] = sum_ci w[ci,co,di,dj] * x[ci,i,j]
# ---------------------------------------------------------------------------
def _convT_kernel(w_ref, x_ref, o_ref):
    # (4*Cout, Cin) @ (Cin, TS): the long spatial dim sits on the lane axis
    # (unmasked stores).  HIGHEST preserves the f32 ConvTranspose2d semantics
    # (Mosaic dot lowering supports only DEFAULT / HIGHEST).
    o_ref[...] = jnp.dot(w_ref[...], x_ref[...],
                         precision=lax.Precision.HIGHEST,
                         preferred_element_type=jnp.float32).astype(o_ref.dtype)


def conv_transpose_up2(x, w):
    """x: (B, Cin, H, W) NCHW;  w: (Cin, Cout, 2, 2) ConvTranspose2d weight."""
    B, Cin, H, W = x.shape
    Cout, k = w.shape[1], w.shape[2]
    assert w.shape == (Cin, Cout, k, k) and k == 2
    HW = H * W
    M = Cout * k * k
    itemsize = x.dtype.itemsize

    xf = x.reshape(B, Cin, HW)                                   # free reshape
    wm = jnp.transpose(w, (1, 2, 3, 0)).reshape(M, Cin)          # tiny reorder

    block_target, vmem_limit = _budgets()
    TS = _pick_spatial_tile(HW, (Cin + M) * itemsize, block_target,
                            force_split=(B == 1))
    grid = (B, pl.cdiv(HW, TS))

    cost = pl.CostEstimate(
        flops=int(2 * B * M * Cin * HW),
        transcendentals=0,
        bytes_accessed=int(itemsize * (B * Cin * HW + B * M * HW + M * Cin)),
    )

    z = pl.pallas_call(
        _convT_kernel,
        out_shape=jax.ShapeDtypeStruct((B, M, HW), x.dtype),
        grid=grid,
        in_specs=[
            pl.BlockSpec((M, Cin), lambda b, t: (0, 0)),          # resident
            pl.BlockSpec((None, Cin, TS), lambda b, t: (b, 0, t)),
        ],
        out_specs=pl.BlockSpec((None, M, TS), lambda b, t: (b, 0, t)),
        compiler_params=pltpu.CompilerParams(
            dimension_semantics=("parallel", "parallel"),
            vmem_limit_bytes=int(vmem_limit)),
        cost_estimate=cost,
    )(wm, xf)

    # TODO(synk): the (co,di,dj)-major -> NCHW interleave below is one XLA
    # transpose pass over the 4x-sized output.  Fusing it in-kernel via 0/1
    # expansion matmuls (as suggested in review) adds ~32*B*C*H*W^2 MXU FLOPs,
    # which at f32/HIGHEST makes the kernel MXU-bound (a net LOSS) for
    # W >~ 64-128 on v5e/v7x and W >~ 256 on v6e; Precision.HIGH is not
    # supported by the Mosaic dot lowering and bf16 would change the module's
    # f32 semantics.  Left unfused (robust, memory-bound); revisit for bf16.
    y = z.reshape(B, Cout, k, k, H, W)
    y = jnp.transpose(y, (0, 1, 4, 2, 5, 3)).reshape(B, Cout, k * H, k * W)
    return y


# ---------------------------------------------------------------------------
# Thin module-like wrapper mirroring UpBlock.__init__ / forward
# ---------------------------------------------------------------------------
class UpBlock:
    def __init__(self, mode="nearest", k=2, stride=2, ch=None, act=None,
                 akwargs=None, nrm=None, nkwargs=None, bias=False, key=None):
        mode = mode.lower()
        if ch is not None and ch[0] != ch[1]:
            raise ValueError("input, output channels must be equal")
        self.mode = mode
        self.stride = int(stride)
        if mode == "conv":
            if not (k == 2 and stride == 2):
                raise NotImplementedError("only k=stride=2 ConvTranspose2d implemented")
            if bias:
                # TODO(synk): ConvTranspose2d bias not implemented.
                raise NotImplementedError
            key = key if key is not None else jax.random.PRNGKey(1)
            # deterministic init; PyTorch ConvTranspose2d weight layout (Cin, Cout, k, k)
            self.w = 0.1 * jax.random.normal(key, (ch[0], ch[1], k, k), jnp.float32)
        elif mode == "convna":
            # TODO(synk): 'convna' (conv + norm + activation) variant not implemented.
            raise NotImplementedError
        else:
            if mode != "nearest":
                # TODO(synk): non-'nearest' Upsample interpolation modes not implemented.
                raise NotImplementedError

    def __call__(self, x):
        if self.mode == "conv":
            return conv_transpose_up2(x, self.w)
        return nearest_upsample(x, self.stride)


if __name__ == "__main__":
    x = jax.random.normal(jax.random.PRNGKey(0), (2, 4, 16, 16), dtype=jnp.float32)

    # Default UpBlock(): nearest-neighbor 2x upsample (grouped small-W path).
    up = UpBlock()
    y = up(x)
    jax.block_until_ready(y)
    ref = jnp.repeat(jnp.repeat(x, 2, axis=2), 2, axis=3)
    assert y.shape == (2, 4, 32, 32)
    assert jnp.allclose(y, ref, atol=1e-6, rtol=1e-6), "nearest upsample mismatch"

    # Larger-W nearest (exercises the E0 compute-once / store-twice path).
    x_wide = jax.random.normal(jax.random.PRNGKey(2), (1, 2, 8, 64), dtype=jnp.float32)
    y_wide = up(x_wide)
    jax.block_until_ready(y_wide)
    ref_wide = jnp.repeat(jnp.repeat(x_wide, 2, axis=2), 2, axis=3)
    assert y_wide.shape == (1, 2, 16, 128)
    assert jnp.allclose(y_wide, ref_wide, atol=1e-6, rtol=1e-6), "wide nearest mismatch"

    # UpBlock(mode='conv', ch=(4, 4)): ConvTranspose2d(4, 4, k=2, stride=2, bias=False).
    up_conv = UpBlock(mode="conv", ch=(4, 4))
    y2 = up_conv(x)
    jax.block_until_ready(y2)
    ref2 = jnp.einsum(
        "bchw,cokl->bohkwl", x, up_conv.w, precision="highest"
    ).reshape(2, 4, 32, 32)
    assert y2.shape == (2, 4, 32, 32)
    assert jnp.allclose(y2, ref2, atol=1e-4, rtol=1e-4), "conv-transpose mismatch"

    print("KERNEL_OK")
</pallas_src>

<mosaic_0001>
module attributes {stable_mosaic.version = 11 : i64} {
  func.func @_nearest_kernel(%arg0: i32, %arg1: memref<32x32xf32, #tpu.memory_space<vmem>>, %arg2: memref<32x128xf32, #tpu.memory_space<vmem>>, %arg3: memref<32x128xf32, #tpu.memory_space<vmem>>) attributes {dimension_semantics = [#tpu.dimension_semantics<parallel>], iteration_bounds = array<i64: 2>, scalar_prefetch = 0 : i64, scratch_operands = 0 : i64, tpu.core_type = #tpu.core_type<tc>, window_params = [{transform_indices = @transform_0, window_bounds = array<i64: 32, 32>}, {pipeline_mode = #tpu.pipeline_mode<synchronous>, transform_indices = @transform_1, window_bounds = array<i64: 32, 128>}, {transform_indices = @transform_2, window_bounds = array<i64: 32, 128>}]} {
    %c0 = arith.constant 0 : index
    %c0_0 = arith.constant 0 : index
    %0 = vector.load %arg1[%c0, %c0_0] : memref<32x32xf32, #tpu.memory_space<vmem>>, vector<32x32xf32>
    %c0_1 = arith.constant 0 : index
    %c0_2 = arith.constant 0 : index
    %1 = vector.load %arg2[%c0_1, %c0_2] : memref<32x128xf32, #tpu.memory_space<vmem>>, vector<32x128xf32>
    %cst = arith.constant dense<0.000000e+00> : vector<32x128xf32>
    %2 = tpu.matmul %0, %1, %cst {dimension_numbers = #tpu.dot_dimension_numbers<[1], [0], [0], [1], [0, 0, 1, 1], [], []>, precision = #tpu.contract_precision<fp32>} : vector<32x32xf32>, vector<32x128xf32>, vector<32x128xf32> -> vector<32x128xf32>
    %c0_3 = arith.constant 0 : index
    %c0_4 = arith.constant 0 : index
    %3 = vector.load %arg3[%c0_3, %c0_4] : memref<32x128xf32, #tpu.memory_space<vmem>>, vector<32x128xf32>
    tpu.vector_store %arg3[%c0_3, %c0_4], %2 {strides = array<i32>} : memref<32x128xf32, #tpu.memory_space<vmem>>, vector<32x128xf32>,
    return
  }
  func.func @transform_0(%arg0: i32) -> (i32, i32) {
    %c0_i32 = arith.constant 0 : i32
    %c0_i32_0 = arith.constant 0 : i32
    return %arg0, %c0_i32 : i32, i32
  }
  func.func @transform_1(%arg0: i32) -> (i32, i32) {
    %c0_i32 = arith.constant 0 : i32
    %c0_i32_0 = arith.constant 0 : i32
    %c0_i32_1 = arith.constant 0 : i32
    return %c0_i32, %c0_i32_0 : i32, i32
  }
  func.func @transform_2(%arg0: i32) -> (i32, i32) {
    %c0_i32 = arith.constant 0 : i32
    %c0_i32_0 = arith.constant 0 : i32
    return %arg0, %c0_i32 : i32, i32
  }
}

</mosaic_0001>

<llo_original>
// kernel: tpu_custom_call.1
$region0: #{tpu_custom_call.1}
  #allocation0 [shape = 'u32[]', space=smem, size = 0x4, offset = 0x4, fixed_abs, tag = 'smem constant byte address 0x4 - core index']
  #allocation1 [shape = 'u32[144,128]{1,0:T(1,128)}', space=vmem, size = 0x12000, scoped, tag = 'internal scratch']
  %s0 = inlined_call_operand.vmem [shape: f32[64,32], index: 0, kind: input, shape index: {}]
  %s1 = inlined_call_operand.vmem [shape: f32[32,128], index: 1, kind: input, shape index: {}]
  %s2 = inlined_call_operand.hbm [shape: f32[64,128], index: 2, kind: output, shape index: {}]
  %s3 = sld [smem:[#allocation0]]
  $region41: #{tpu_custom_call.1} parent=0
    _
  %s5 = ssub.s32 1, %s3
  %s6 = scalar_select 0, %s5, %s3
  $region1: #{tpu_custom_call.1} parent=0
    #allocation2 [shape = 'u8[32768]{0}', space=vmem, size = 0x8000, scoped, tag = 'output window, operand 0']
    #allocation3 [shape = 's32[2]{0}', space=sflag, size = 0x8, scoped, tag = 'scoped memory for tpu_custom_call.1']
    %7 = vsyncpa [#allocation3], 0
    %s8 = scalar_lea.sflag [#allocation3], 1
    %9 = vsyncpa %s8, 0
    loop: start=0, step=1, limit=4
    $region2: #{tpu_custom_call.1} parent=1 // loop_pre_header
      _
    $region3: #{tpu_custom_call.1} parent=1 // loop_header
      %s11 = sphi 0, %s15
      %p12 = scmp.ge.s32.totalorder %s11, 4
      %s21 = sphi 0, %s23
      %s24 = sphi 0, %s21
      %s25 = sphi 0, %s24
      %s41 = sphi 0, %s25
      %s45 = sphi 0, %s45
      %s47 = sphi 0, %s45
      %s48 = sphi 0, %s47
      %s62 = sphi 0, %s48
      %s68 = sphi 0, %s70
      %s71 = sphi 0, %s68
      %s72 = sphi 0, %s71
      %s88 = sphi 0, %s72
    $region4: #{tpu_custom_call.1} parent=1 // loop_header_branch
      %14 = sbr.rel (%p12) target = $region8
    $region5: #{tpu_custom_call.1} parent=1 // loop_body
      %s16 = ssub.s32 %s11, 1
      %s17 = ssub.s32 %s11, 2
      %s18 = sadd.s32 %s11, 1
      %s19 = ssub.s32 %s11, %s18
      %p20 = scmp.eq.s32.totalorder %s19, 0
      %s22 = sadd.s32 %s21, 1
      %s23 = scalar_select %p20, %s21, %s22
      %p26 = pneg %p20
      %p27 = scmp.eq.s32.totalorder %s11, 1
      %p28 = por %p26, %p27
      %p29 = scmp.ne.s32.totalorder %s21, %s24
      %p30 = scmp.eq.s32.totalorder %s11, 0
      %p31 = por %p29, %p30
      %p32 = scmp.ne.s32.totalorder %s21, %s24
      %p33 = scmp.eq.s32.totalorder %s16, 1
      %p34 = por %p32, %p33
      %p35 = scmp.ne.s32.totalorder %s24, %s25
      %p36 = scmp.eq.s32.totalorder %s16, 0
      %p37 = por %p35, %p36
      %p38 = scmp.ne.s32.totalorder %s24, %s25
      %p39 = scmp.eq.s32.totalorder %s17, 1
      %p40 = por %p38, %p39
      %p42 = scmp.ne.s32.totalorder %s25, %s41
      %p43 = scmp.eq.s32.totalorder %s17, 0
      %p44 = por %p42, %p43
      %s46 = sadd.s32 %s45, 1
      %p49 = scmp.eq.s32.totalorder %s11, 1
      %p50 = scmp.ne.s32.totalorder %s45, %s47
      %p51 = scmp.eq.s32.totalorder %s11, 0
      %p52 = por %p50, %p51
      %p53 = scmp.ne.s32.totalorder %s45, %s47
      %p54 = scmp.eq.s32.totalorder %s16, 1
      %p55 = por %p53, %p54
      %p56 = scmp.ne.s32.totalorder %s47, %s48
      %p57 = scmp.eq.s32.totalorder %s16, 0
      %p58 = por %p56, %p57
      %p59 = scmp.ne.s32.totalorder %s47, %s48
      %p60 = scmp.eq.s32.totalorder %s17, 1
      %p61 = por %p59, %p60
      %p63 = scmp.ne.s32.totalorder %s48, %s62
      %p64 = scmp.eq.s32.totalorder %s17, 0
      %p65 = por %p63, %p64
      %s66 = ssub.s32 %s11, %s18
      %p67 = scmp.eq.s32.totalorder %s66, 0
      %s69 = sadd.s32 %s68, 1
      %s70 = scalar_select %p67, %s68, %s69
      %p73 = pneg %p67
      %p74 = scmp.eq.s32.totalorder %s11, 1
      %p75 = por %p73, %p74
      %p76 = scmp.ne.s32.totalorder %s68, %s71
      %p77 = scmp.eq.s32.totalorder %s11, 0
      %p78 = por %p76, %p77
      %p79 = scmp.ne.s32.totalorder %s68, %s71
      %p80 = scmp.eq.s32.totalorder %s16, 1
      %p81 = por %p79, %p80
      %p82 = scmp.ne.s32.totalorder %s71, %s72
      %p83 = scmp.eq.s32.totalorder %s16, 0
      %p84 = por %p82, %p83
      %p85 = scmp.ne.s32.totalorder %s71, %s72
      %p86 = scmp.eq.s32.totalorder %s17, 1
      %p87 = por %p85, %p86
      %p89 = scmp.ne.s32.totalorder %s72, %s88
      %p90 = scmp.eq.s32.totalorder %s17, 0
      %p91 = por %p89, %p90
      %p92 = scmp.le.s32.totalorder 1, %s11
      %p93 = scmp.lt.s32.totalorder %s11, 3
      %p94 = pnand %p92, %p93
      %p95 = pneg %p94
      // Predicated region
      $region9: #{tpu_custom_call.1} parent=5 // pred_check
        _
      $region10: #{tpu_custom_call.1} parent=5 // pred_check_branch
        %97 = sbr.rel (%p94) target = $region12
      $region11: #{tpu_custom_call.1} parent=5 // pred_region
        %s98 = ssub.s32 %s11, 1
        // Predicated region
        $region13: #{tpu_custom_call.1} parent=11 // pred_check
          %p99 = pneg %p58
        $region14: #{tpu_custom_call.1} parent=11 // pred_check_branch
          %101 = sbr.rel (%p99) target = $region16
        $region15: #{tpu_custom_call.1} parent=11 // pred_region
          _
        $region16: #{tpu_custom_call.1} parent=11 // pred_fallthru
          _
      $region12: #{tpu_custom_call.1} parent=5 // pred_fallthru
        _
      %p102 = scmp.lt.s32.totalorder %s11, 2
      // Predicated region
      $region17: #{tpu_custom_call.1} parent=5 // pred_check
        %p103 = pneg %p102
      $region18: #{tpu_custom_call.1} parent=5 // pred_check_branch
        %105 = sbr.rel (%p103) target = $region20
      $region19: #{tpu_custom_call.1} parent=5 // pred_region
        // Predicated region
        $region21: #{tpu_custom_call.1} parent=19 // pred_check
          %p106 = pneg %p31
        $region22: #{tpu_custom_call.1} parent=19 // pred_check_branch
          %108 = sbr.rel (%p106) target = $region24
        $region23: #{tpu_custom_call.1} parent=19 // pred_region
          %s109 = smul.u32 4, %s11
          %p110 = scmp.lt.s32.totalorder %s109, 7
          %s111 = scalar_select %p110, %s109, 7
          %s112 = smul.addr %s111, 8
          %s113 = scalar_lea.vmem %s0, %s112
          %s114 = smul.u32 4, %s11
        $region24: #{tpu_custom_call.1} parent=19 // pred_fallthru
          _
      $region20: #{tpu_custom_call.1} parent=5 // pred_fallthru
        _
      %p115 = scmp.le.s32.totalorder 1, %s11
      %p116 = scmp.lt.s32.totalorder %s11, 3
      %p117 = pnand %p115, %p116
      %p118 = pneg %p117
      // Predicated region
      $region25: #{tpu_custom_call.1} parent=5 // pred_check
        _
      $region26: #{tpu_custom_call.1} parent=5 // pred_check_branch
        %120 = sbr.rel (%p117) target = $region28
      $region27: #{tpu_custom_call.1} parent=5 // pred_region
        %s121 = ssub.s32 %s11, 1
        %s122 = smul.u32 4, %s16
        %p123 = scmp.lt.s32.totalorder %s122, 7
        %s124 = scalar_select %p123, %s122, 7
        %s125 = smul.addr %s124, 8
        %s126 = scalar_lea.vmem %s0, %s125
        %p127 = pneg %p37
        %p128 = pneg %p34
        %p129 = pneg %p58
        %p130 = pneg %p55
        %p131 = pneg %p84
        %p132 = pneg %p81
        %s133 = sand.u32 %s71, 1
        %s134 = scalar_lea.sflag [#allocation3], %s133
        %s135 = sand.u32 %s71, 1
        %s136 = smul.addr %s135, 32
        %s137 = scalar_lea.vmem [#allocation2], %s136
        %s138 = smul.u32 4, %s16
        %p139 = scmp.lt.s32.totalorder %s138, 7
        %s140 = scalar_select %p139, %s138, 7
        %s141 = smul.addr %s140, 8
        %s142 = scalar_lea.vmem %s0, %s141
        %s143 = smul.u32 4, %s16
        %s144 = smul.u32 4, %s16
        %v145 = vld [vmem:[%s142] sm:$0xff]
        %v146 = vld [vmem:[%s142 + $0x8] sm:$0xff]
        %v147 = vld [vmem:[%s142 + $0x10] sm:$0xff]
        %v148 = vld [vmem:[%s142 + $0x18] sm:$0xff]
        %v149 = vld [vmem:[%s1] sm:$0xff]
        %v150 = vld [vmem:[%s1 + $0x8] sm:$0xff]
        %v151 = vld [vmem:[%s1 + $0x10] sm:$0xff]
        %v152 = vld [vmem:[%s1 + $0x18] sm:$0xff]
        %vm153 = vcmask 261120
        %v155 = vsel %vm153, %v145, 0
        %v158 = vsel %vm153, %v146, 0
        %v161 = vsel %vm153, %v147, 0
        %v164 = vsel %vm153, %v148, 0
        %166 = vmatprep.subr.mxu0 0.0
        %v167 = vand.u32 %v149, 4294901760
        %168 = vmatpush1.msra.mxu0 %v167
        %169 = vmatprep.subr.mxu0 0.0
        %v170 = vand.u32 %v150, 4294901760
        %171 = vmatpush1.msra.mxu0 %v170
        %172 = vmatprep.subr.mxu0 0.0
        %v173 = vand.u32 %v151, 4294901760
        %174 = vmatpush1.msra.mxu0 %v173
        %175 = vmatprep.subr.mxu0 0.0
        %v176 = vand.u32 %v152, 4294901760
        %177 = vmatpush1.msra.mxu0 %v176
        %178 = vmatprep.subr.mxu0 0.0
        %179 = vmatpush1.msra.mxu0 0.0
        %180 = vmatprep.subr.mxu0 0.0
        %181 = vmatpush1.msra.mxu0 0.0
        %182 = vmatprep.subr.mxu0 0.0
        %183 = vmatpush1.msra.mxu0 0.0
        %184 = vmatprep.subr.mxu0 0.0
        %185 = vmatpush1.msra.mxu0 0.0
        %186 = vmatprep.subr.mxu0 0.0
        %187 = vmatpush1.msra.mxu0 0.0
        %188 = vmatprep.subr.mxu0 0.0
        %189 = vmatpush1.msra.mxu0 0.0
        %190 = vmatprep.subr.mxu0 0.0
        %191 = vmatpush1.msra.mxu0 0.0
        %192 = vmatprep.subr.mxu0 0.0
        %193 = vmatpush1.msra.mxu0 0.0
        %194 = vmatprep.subr.mxu0 0.0
        %195 = vmatpush1.msra.mxu0 0.0
        %196 = vmatprep.subr.mxu0 0.0
        %197 = vmatpush1.msra.mxu0 0.0
        %198 = vmatprep.subr.mxu0 0.0
        %199 = vmatpush1.msra.mxu0 0.0
        %200 = vmatprep.subr.mxu0 0.0
        %201 = vmatpush1.msra.mxu0 0.0
        %202 = vmatprep.subr.mxu0 0.0
        %203 = vmatpush1.msra.mxu0 0.0
        %204 = vmatprep.subr.mxu0 0.0
        %205 = vmatpush1.msra.mxu0 0.0
        %206 = vmatprep.subr.mxu0 0.0
        %207 = vmatpush1.msra.mxu0 0.0
        %208 = vmatprep.subr.mxu0 0.0
        %209 = vmatpush1.msra.mxu0 0.0
        %210 = vmatprep.subr.mxu0 0.0
        %211 = vmatpush1.msra.mxu0 0.0
        %212 = vmatprep.subr.mxu0 0.0
        %213 = vmatpush1.msra.mxu0 0.0
        %214 = vmatprep.subr.mxu0 0.0
        %215 = vmatpush1.msra.mxu0 0.0
        %216 = vmatprep.subr.mxu0 0.0
        %217 = vmatpush1.msra.mxu0 0.0
        %218 = vmatprep.subr.mxu0 0.0
        %219 = vmatpush1.msra.mxu0 0.0
        %220 = vmatprep.subr.mxu0 0.0
        %221 = vmatpush1.msra.mxu0 0.0
        %222 = vmatprep.subr.mxu0 0.0
        %223 = vmatpush1.msra.mxu0 0.0
        %224 = vmatprep.subr.mxu0 0.0
        %225 = vmatpush1.msra.mxu0 0.0
        %226 = vmatprep.subr.mxu0 0.0
        %227 = vmatpush1.msra.mxu0 0.0
        %228 = vmatprep.subr.mxu0 0.0
        %229 = vmatpush1.msra.mxu0 0.0
        %230 = vmatprep.subr.mxu0 0.0
        %231 = vmatpush1.msra.mxu0 0.0
        %232 = vmatprep.subr.mxu0 0.0
        %233 = vmatpush1.msra.mxu0 0.0
        %234 = vmatprep.mubr.f32.mxu0 0.0
        %v235 = vand.u32 %v155, 4294901760
        %v236 = vsub.f32 %v155, %v235
        %v237 = vand.u32 %v236, 4294901760
        %v238 = vsub.f32 %v236, %v237
        %v239 = vand.u32 %v238, 4294901760
        %240 = vmatmul.mubr.f32.gmra.mrb[0].mxu0 %v239
        %v241 = vpop.f32.mrb[0].mxu0
        %v242 = vadd.f32 0.0, %v241
        %v243 = vpop.f32.mrb[0].mxu0
        %244 = vmatprep.mubr.f32.mxu0 0.0
        %v245 = vand.u32 %v158, 4294901760
        %v246 = vsub.f32 %v158, %v245
        %v247 = vand.u32 %v246, 4294901760
        %v248 = vsub.f32 %v246, %v247
        %v249 = vand.u32 %v248, 4294901760
        %250 = vmatmul.mubr.f32.gmra.mrb[0].mxu0 %v249
        %v251 = vpop.f32.mrb[0].mxu0
        %v252 = vadd.f32 0.0, %v251
        %v253 = vpop.f32.mrb[0].mxu0
        %254 = vmatprep.mubr.f32.mxu0 0.0
        %v255 = vand.u32 %v161, 4294901760
        %v256 = vsub.f32 %v161, %v255
        %v257 = vand.u32 %v256, 4294901760
        %v258 = vsub.f32 %v256, %v257
        %v259 = vand.u32 %v258, 4294901760
        %260 = vmatmul.mubr.f32.gmra.mrb[0].mxu0 %v259
        %v261 = vpop.f32.mrb[0].mxu0
        %v262 = vadd.f32 0.0, %v261
        %v263 = vpop.f32.mrb[0].mxu0
        %264 = vmatprep.mubr.f32.mxu0 0.0
        %v265 = vand.u32 %v164, 4294901760
        %v266 = vsub.f32 %v164, %v265
        %v267 = vand.u32 %v266, 4294901760
        %v268 = vsub.f32 %v266, %v267
        %v269 = vand.u32 %v268, 4294901760
        %270 = vmatmul.mubr.f32.gmra.mrb[0].mxu0 %v269
        %v271 = vpop.f32.mrb[0].mxu0
        %v272 = vadd.f32 0.0, %v271
        %v273 = vpop.f32.mrb[0].mxu0
        %274 = vdwg.mxu0
        %275 = vmatprep.subr.mxu0 0.0
        %v276 = vand.u32 %v149, 4294901760
        %v277 = vsub.f32 %v149, %v276
        %v278 = vand.u32 %v277, 4294901760
        %v279 = vsub.f32 %v277, %v278
        %v280 = vand.u32 %v279, 4294901760
        %281 = vmatpush1.msra.mxu0 %v280
        %282 = vmatprep.subr.mxu0 0.0
        %v283 = vand.u32 %v150, 4294901760
        %v284 = vsub.f32 %v150, %v283
        %v285 = vand.u32 %v284, 4294901760
        %v286 = vsub.f32 %v284, %v285
        %v287 = vand.u32 %v286, 4294901760
        %288 = vmatpush1.msra.mxu0 %v287
        %289 = vmatprep.subr.mxu0 0.0
        %v290 = vand.u32 %v151, 4294901760
        %v291 = vsub.f32 %v151, %v290
        %v292 = vand.u32 %v291, 4294901760
        %v293 = vsub.f32 %v291, %v292
        %v294 = vand.u32 %v293, 4294901760
        %295 = vmatpush1.msra.mxu0 %v294
        %296 = vmatprep.subr.mxu0 0.0
        %v297 = vand.u32 %v152, 4294901760
        %v298 = vsub.f32 %v152, %v297
        %v299 = vand.u32 %v298, 4294901760
        %v300 = vsub.f32 %v298, %v299
        %v301 = vand.u32 %v300, 4294901760
        %302 = vmatpush1.msra.mxu0 %v301
        %303 = vmatprep.subr.mxu0 0.0
        %304 = vmatpush1.msra.mxu0 0.0
        %305 = vmatprep.subr.mxu0 0.0
        %306 = vmatpush1.msra.mxu0 0.0
        %307 = vmatprep.subr.mxu0 0.0
        %308 = vmatpush1.msra.mxu0 0.0
        %309 = vmatprep.subr.mxu0 0.0
        %310 = vmatpush1.msra.mxu0 0.0
        %311 = vmatprep.subr.mxu0 0.0
        %312 = vmatpush1.msra.mxu0 0.0
        %313 = vmatprep.subr.mxu0 0.0
        %314 = vmatpush1.msra.mxu0 0.0
        %315 = vmatprep.subr.mxu0 0.0
        %316 = vmatpush1.msra.mxu0 0.0
        %317 = vmatprep.subr.mxu0 0.0
        %318 = vmatpush1.msra.mxu0 0.0
        %319 = vmatprep.subr.mxu0 0.0
        %320 = vmatpush1.msra.mxu0 0.0
        %321 = vmatprep.subr.mxu0 0.0
        %322 = vmatpush1.msra.mxu0 0.0
        %323 = vmatprep.subr.mxu0 0.0
        %324 = vmatpush1.msra.mxu0 0.0
        %325 = vmatprep.subr.mxu0 0.0
        %326 = vmatpush1.msra.mxu0 0.0
        %327 = vmatprep.subr.mxu0 0.0
        %328 = vmatpush1.msra.mxu0 0.0
        %329 = vmatprep.subr.mxu0 0.0
        %330 = vmatpush1.msra.mxu0 0.0
        %331 = vmatprep.subr.mxu0 0.0
        %332 = vmatpush1.msra.mxu0 0.0
        %333 = vmatprep.subr.mxu0 0.0
        %334 = vmatpush1.msra.mxu0 0.0
        %335 = vmatprep.subr.mxu0 0.0
        %336 = vmatpush1.msra.mxu0 0.0
        %337 = vmatprep.subr.mxu0 0.0
        %338 = vmatpush1.msra.mxu0 0.0
        %339 = vmatprep.subr.mxu0 0.0
        %340 = vmatpush1.msra.mxu0 0.0
        %341 = vmatprep.subr.mxu0 0.0
        %342 = vmatpush1.msra.mxu0 0.0
        %343 = vmatprep.subr.mxu0 0.0
        %344 = vmatpush1.msra.mxu0 0.0
        %345 = vmatprep.subr.mxu0 0.0
        %346 = vmatpush1.msra.mxu0 0.0
        %347 = vmatprep.subr.mxu0 0.0
        %348 = vmatpush1.msra.mxu0 0.0
        %349 = vmatprep.subr.mxu0 0.0
        %350 = vmatpush1.msra.mxu0 0.0
        %351 = vmatprep.subr.mxu0 0.0
        %352 = vmatpush1.msra.mxu0 0.0
        %353 = vmatprep.subr.mxu0 0.0
        %354 = vmatpush1.msra.mxu0 0.0
        %355 = vmatprep.subr.mxu0 0.0
        %356 = vmatpush1.msra.mxu0 0.0
        %357 = vmatprep.subr.mxu0 0.0
        %358 = vmatpush1.msra.mxu0 0.0
        %359 = vmatprep.mubr.f32.mxu0 0.0
        %v360 = vand.u32 %v155, 4294901760
        %361 = vmatmul.mubr.f32.gmra.mrb[0].mxu0 %v360
        %v362 = vpop.f32.mrb[0].mxu0
        %v363 = vadd.f32 %v242, %v362
        %v364 = vpop.f32.mrb[0].mxu0
        %365 = vmatprep.mubr.f32.mxu0 0.0
        %v366 = vand.u32 %v158, 4294901760
        %367 = vmatmul.mubr.f32.gmra.mrb[0].mxu0 %v366
        %v368 = vpop.f32.mrb[0].mxu0
        %v369 = vadd.f32 %v252, %v368
        %v370 = vpop.f32.mrb[0].mxu0
        %371 = vmatprep.mubr.f32.mxu0 0.0
        %v372 = vand.u32 %v161, 4294901760
        %373 = vmatmul.mubr.f32.gmra.mrb[0].mxu0 %v372
        %v374 = vpop.f32.mrb[0].mxu0
        %v375 = vadd.f32 %v262, %v374
        %v376 = vpop.f32.mrb[0].mxu0
        %377 = vmatprep.mubr.f32.mxu0 0.0
        %v378 = vand.u32 %v164, 4294901760
        %379 = vmatmul.mubr.f32.gmra.mrb[0].mxu0 %v378
        %v380 = vpop.f32.mrb[0].mxu0
        %v381 = vadd.f32 %v272, %v380
        %v382 = vpop.f32.mrb[0].mxu0
        %383 = vdwg.mxu0
        %384 = vmatprep.subr.mxu0 0.0
        %v385 = vand.u32 %v149, 4294901760
        %v386 = vsub.f32 %v149, %v385
        %387 = vmatpush1.msra.mxu0 %v386
        %388 = vmatprep.subr.mxu0 0.0
        %v389 = vand.u32 %v150, 4294901760
        %v390 = vsub.f32 %v150, %v389
        %391 = vmatpush1.msra.mxu0 %v390
        %392 = vmatprep.subr.mxu0 0.0
        %v393 = vand.u32 %v151, 4294901760
        %v394 = vsub.f32 %v151, %v393
        %395 = vmatpush1.msra.mxu0 %v394
        %396 = vmatprep.subr.mxu0 0.0
        %v397 = vand.u32 %v152, 4294901760
        %v398 = vsub.f32 %v152, %v397
        %399 = vmatpush1.msra.mxu0 %v398
        %400 = vmatprep.subr.mxu0 0.0
        %401 = vmatpush1.msra.mxu0 0.0
        %402 = vmatprep.subr.mxu0 0.0
        %403 = vmatpush1.msra.mxu0 0.0
        %404 = vmatprep.subr.mxu0 0.0
        %405 = vmatpush1.msra.mxu0 0.0
        %406 = vmatprep.subr.mxu0 0.0
        %407 = vmatpush1.msra.mxu0 0.0
        %408 = vmatprep.subr.mxu0 0.0
        %409 = vmatpush1.msra.mxu0 0.0
        %410 = vmatprep.subr.mxu0 0.0
        %411 = vmatpush1.msra.mxu0 0.0
        %412 = vmatprep.subr.mxu0 0.0
        %413 = vmatpush1.msra.mxu0 0.0
        %414 = vmatprep.subr.mxu0 0.0
        %415 = vmatpush1.msra.mxu0 0.0
        %416 = vmatprep.subr.mxu0 0.0
        %417 = vmatpush1.msra.mxu0 0.0
        %418 = vmatprep.subr.mxu0 0.0
        %419 = vmatpush1.msra.mxu0 0.0
        %420 = vmatprep.subr.mxu0 0.0
        %421 = vmatpush1.msra.mxu0 0.0
        %422 = vmatprep.subr.mxu0 0.0
        %423 = vmatpush1.msra.mxu0 0.0
        %424 = vmatprep.subr.mxu0 0.0
        %425 = vmatpush1.msra.mxu0 0.0
        %426 = vmatprep.subr.mxu0 0.0
        %427 = vmatpush1.msra.mxu0 0.0
        %428 = vmatprep.subr.mxu0 0.0
        %429 = vmatpush1.msra.mxu0 0.0
        %430 = vmatprep.subr.mxu0 0.0
        %431 = vmatpush1.msra.mxu0 0.0
        %432 = vmatprep.subr.mxu0 0.0
        %433 = vmatpush1.msra.mxu0 0.0
        %434 = vmatprep.subr.mxu0 0.0
        %435 = vmatpush1.msra.mxu0 0.0
        %436 = vmatprep.subr.mxu0 0.0
        %437 = vmatpush1.msra.mxu0 0.0
        %438 = vmatprep.subr.mxu0 0.0
        %439 = vmatpush1.msra.mxu0 0.0
        %440 = vmatprep.subr.mxu0 0.0
        %441 = vmatpush1.msra.mxu0 0.0
        %442 = vmatprep.subr.mxu0 0.0
        %443 = vmatpush1.msra.mxu0 0.0
        %444 = vmatprep.subr.mxu0 0.0
        %445 = vmatpush1.msra.mxu0 0.0
        %446 = vmatprep.subr.mxu0 0.0
        %447 = vmatpush1.msra.mxu0 0.0
        %448 = vmatprep.subr.mxu0 0.0
        %449 = vmatpush1.msra.mxu0 0.0
        %450 = vmatprep.subr.mxu0 0.0
        %451 = vmatpush1.msra.mxu0 0.0
        %452 = vmatprep.subr.mxu0 0.0
        %453 = vmatpush1.msra.mxu0 0.0
        %454 = vmatprep.subr.mxu0 0.0
        %455 = vmatpush1.msra.mxu0 0.0
        %456 = vmatprep.mubr.f32.mxu0 0.0
        %v457 = vand.u32 %v155, 4294901760
        %v458 = vsub.f32 %v155, %v457
        %459 = vmatmul.mubr.f32.gmra.mrb[0].mxu0 %v458
        %v460 = vpop.f32.mrb[0].mxu0
        %v461 = vadd.f32 %v363, %v460
        %v462 = vpop.f32.mrb[0].mxu0
        %463 = vmatprep.mubr.f32.mxu0 0.0
        %v464 = vand.u32 %v158, 4294901760
        %v465 = vsub.f32 %v158, %v464
        %466 = vmatmul.mubr.f32.gmra.mrb[0].mxu0 %v465
        %v467 = vpop.f32.mrb[0].mxu0
        %v468 = vadd.f32 %v369, %v467
        %v469 = vpop.f32.mrb[0].mxu0
        %470 = vmatprep.mubr.f32.mxu0 0.0
        %v471 = vand.u32 %v161, 4294901760
        %v472 = vsub.f32 %v161, %v471
        %473 = vmatmul.mubr.f32.gmra.mrb[0].mxu0 %v472
        %v474 = vpop.f32.mrb[0].mxu0
        %v475 = vadd.f32 %v375, %v474
        %v476 = vpop.f32.mrb[0].mxu0
        %477 = vmatprep.mubr.f32.mxu0 0.0
        %v478 = vand.u32 %v164, 4294901760
        %v479 = vsub.f32 %v164, %v478
        %480 = vmatmul.mubr.f32.gmra.mrb[0].mxu0 %v479
        %v481 = vpop.f32.mrb[0].mxu0
        %v482 = vadd.f32 %v381, %v481
        %v483 = vpop.f32.mrb[0].mxu0
        %484 = vdwg.mxu0
        %485 = vmatprep.subr.mxu0 0.0
        %v486 = vand.u32 %v149, 4294901760
        %487 = vmatpush1.msra.mxu0 %v486
        %488 = vmatprep.subr.mxu0 0.0
        %v489 = vand.u32 %v150, 4294901760
        %490 = vmatpush1.msra.mxu0 %v489
        %491 = vmatprep.subr.mxu0 0.0
        %v492 = vand.u32 %v151, 4294901760
        %493 = vmatpush1.msra.mxu0 %v492
        %494 = vmatprep.subr.mxu0 0.0
        %v495 = vand.u32 %v152, 4294901760
        %496 = vmatpush1.msra.mxu0 %v495
        %497 = vmatprep.subr.mxu0 0.0
        %498 = vmatpush1.msra.mxu0 0.0
        %499 = vmatprep.subr.mxu0 0.0
        %500 = vmatpush1.msra.mxu0 0.0
        %501 = vmatprep.subr.mxu0 0.0
        %502 = vmatpush1.msra.mxu0 0.0
        %503 = vmatprep.subr.mxu0 0.0
        %504 = vmatpush1.msra.mxu0 0.0
        %505 = vmatprep.subr.mxu0 0.0
        %506 = vmatpush1.msra.mxu0 0.0
        %507 = vmatprep.subr.mxu0 0.0
        %508 = vmatpush1.msra.mxu0 0.0
        %509 = vmatprep.subr.mxu0 0.0
        %510 = vmatpush1.msra.mxu0 0.0
        %511 = vmatprep.subr.mxu0 0.0
        %512 = vmatpush1.msra.mxu0 0.0
        %513 = vmatprep.subr.mxu0 0.0
        %514 = vmatpush1.msra.mxu0 0.0
        %515 = vmatprep.subr.mxu0 0.0
        %516 = vmatpush1.msra.mxu0 0.0
        %517 = vmatprep.subr.mxu0 0.0
        %518 = vmatpush1.msra.mxu0 0.0
        %519 = vmatprep.subr.mxu0 0.0
        %520 = vmatpush1.msra.mxu0 0.0
        %521 = vmatprep.subr.mxu0 0.0
        %522 = vmatpush1.msra.mxu0 0.0
        %523 = vmatprep.subr.mxu0 0.0
        %524 = vmatpush1.msra.mxu0 0.0
        %525 = vmatprep.subr.mxu0 0.0
        %526 = vmatpush1.msra.mxu0 0.0
        %527 = vmatprep.subr.mxu0 0.0
        %528 = vmatpush1.msra.mxu0 0.0
        %529 = vmatprep.subr.mxu0 0.0
        %530 = vmatpush1.msra.mxu0 0.0
        %531 = vmatprep.subr.mxu0 0.0
        %532 = vmatpush1.msra.mxu0 0.0
        %533 = vmatprep.subr.mxu0 0.0
        %534 = vmatpush1.msra.mxu0 0.0
        %535 = vmatprep.subr.mxu0 0.0
        %536 = vmatpush1.msra.mxu0 0.0
        %537 = vmatprep.subr.mxu0 0.0
        %538 = vmatpush1.msra.mxu0 0.0
        %539 = vmatprep.subr.mxu0 0.0
        %540 = vmatpush1.msra.mxu0 0.0
        %541 = vmatprep.subr.mxu0 0.0
        %542 = vmatpush1.msra.mxu0 0.0
        %543 = vmatprep.subr.mxu0 0.0
        %544 = vmatpush1.msra.mxu0 0.0
        %545 = vmatprep.subr.mxu0 0.0
        %546 = vmatpush1.msra.mxu0 0.0
        %547 = vmatprep.subr.mxu0 0.0
        %548 = vmatpush1.msra.mxu0 0.0
        %549 = vmatprep.subr.mxu0 0.0
        %550 = vmatpush1.msra.mxu0 0.0
        %551 = vmatprep.subr.mxu0 0.0
        %552 = vmatpush1.msra.mxu0 0.0
        %553 = vmatprep.mubr.f32.mxu0 0.0
        %v554 = vand.u32 %v155, 4294901760
        %v555 = vsub.f32 %v155, %v554
        %v556 = vand.u32 %v555, 4294901760
        %557 = vmatmul.mubr.f32.gmra.mrb[0].mxu0 %v556
        %v558 = vpop.f32.mrb[0].mxu0
        %v559 = vadd.f32 %v461, %v558
        %v560 = vpop.f32.mrb[0].mxu0
        %561 = vmatprep.mubr.f32.mxu0 0.0
        %v562 = vand.u32 %v158, 4294901760
        %v563 = vsub.f32 %v158, %v562
        %v564 = vand.u32 %v563, 4294901760
        %565 = vmatmul.mubr.f32.gmra.mrb[0].mxu0 %v564
        %v566 = vpop.f32.mrb[0].mxu0
        %v567 = vadd.f32 %v468, %v566
        %v568 = vpop.f32.mrb[0].mxu0
        %569 = vmatprep.mubr.f32.mxu0 0.0
        %v570 = vand.u32 %v161, 4294901760
        %v571 = vsub.f32 %v161, %v570
        %v572 = vand.u32 %v571, 4294901760
        %573 = vmatmul.mubr.f32.gmra.mrb[0].mxu0 %v572
        %v574 = vpop.f32.mrb[0].mxu0
        %v575 = vadd.f32 %v475, %v574
        %v576 = vpop.f32.mrb[0].mxu0
        %577 = vmatprep.mubr.f32.mxu0 0.0
        %v578 = vand.u32 %v164, 4294901760
        %v579 = vsub.f32 %v164, %v578
        %v580 = vand.u32 %v579, 4294901760
        %581 = vmatmul.mubr.f32.gmra.mrb[0].mxu0 %v580
        %v582 = vpop.f32.mrb[0].mxu0
        %v583 = vadd.f32 %v482, %v582
        %v584 = vpop.f32.mrb[0].mxu0
        %585 = vdwg.mxu0
        %586 = vmatprep.subr.mxu0 0.0
        %v587 = vand.u32 %v149, 4294901760
        %v588 = vsub.f32 %v149, %v587
        %v589 = vand.u32 %v588, 4294901760
        %590 = vmatpush1.msra.mxu0 %v589
        %591 = vmatprep.subr.mxu0 0.0
        %v592 = vand.u32 %v150, 4294901760
        %v593 = vsub.f32 %v150, %v592
        %v594 = vand.u32 %v593, 4294901760
        %595 = vmatpush1.msra.mxu0 %v594
        %596 = vmatprep.subr.mxu0 0.0
        %v597 = vand.u32 %v151, 4294901760
        %v598 = vsub.f32 %v151, %v597
        %v599 = vand.u32 %v598, 4294901760
        %600 = vmatpush1.msra.mxu0 %v599
        %601 = vmatprep.subr.mxu0 0.0
        %v602 = vand.u32 %v152, 4294901760
        %v603 = vsub.f32 %v152, %v602
        %v604 = vand.u32 %v603, 4294901760
        %605 = vmatpush1.msra.mxu0 %v604
        %606 = vmatprep.subr.mxu0 0.0
        %607 = vmatpush1.msra.mxu0 0.0
        %608 = vmatprep.subr.mxu0 0.0
        %609 = vmatpush1.msra.mxu0 0.0
        %610 = vmatprep.subr.mxu0 0.0
        %611 = vmatpush1.msra.mxu0 0.0
        %612 = vmatprep.subr.mxu0 0.0
        %613 = vmatpush1.msra.mxu0 0.0
        %614 = vmatprep.subr.mxu0 0.0
        %615 = vmatpush1.msra.mxu0 0.0
        %616 = vmatprep.subr.mxu0 0.0
        %617 = vmatpush1.msra.mxu0 0.0
        %618 = vmatprep.subr.mxu0 0.0
        %619 = vmatpush1.msra.mxu0 0.0
        %620 = vmatprep.subr.mxu0 0.0
        %621 = vmatpush1.msra.mxu0 0.0
        %622 = vmatprep.subr.mxu0 0.0
        %623 = vmatpush1.msra.mxu0 0.0
        %624 = vmatprep.subr.mxu0 0.0
        %625 = vmatpush1.msra.mxu0 0.0
        %626 = vmatprep.subr.mxu0 0.0
        %627 = vmatpush1.msra.mxu0 0.0
        %628 = vmatprep.subr.mxu0 0.0
        %629 = vmatpush1.msra.mxu0 0.0
        %630 = vmatprep.subr.mxu0 0.0
        %631 = vmatpush1.msra.mxu0 0.0
        %632 = vmatprep.subr.mxu0 0.0
        %633 = vmatpush1.msra.mxu0 0.0
        %634 = vmatprep.subr.mxu0 0.0
        %635 = vmatpush1.msra.mxu0 0.0
        %636 = vmatprep.subr.mxu0 0.0
        %637 = vmatpush1.msra.mxu0 0.0
        %638 = vmatprep.subr.mxu0 0.0
        %639 = vmatpush1.msra.mxu0 0.0
        %640 = vmatprep.subr.mxu0 0.0
        %641 = vmatpush1.msra.mxu0 0.0
        %642 = vmatprep.subr.mxu0 0.0
        %643 = vmatpush1.msra.mxu0 0.0
        %644 = vmatprep.subr.mxu0 0.0
        %645 = vmatpush1.msra.mxu0 0.0
        %646 = vmatprep.subr.mxu0 0.0
        %647 = vmatpush1.msra.mxu0 0.0
        %648 = vmatprep.subr.mxu0 0.0
        %649 = vmatpush1.msra.mxu0 0.0
        %650 = vmatprep.subr.mxu0 0.0
        %651 = vmatpush1.msra.mxu0 0.0
        %652 = vmatprep.subr.mxu0 0.0
        %653 = vmatpush1.msra.mxu0 0.0
        %654 = vmatprep.subr.mxu0 0.0
        %655 = vmatpush1.msra.mxu0 0.0
        %656 = vmatprep.subr.mxu0 0.0
        %657 = vmatpush1.msra.mxu0 0.0
        %658 = vmatprep.subr.mxu0 0.0
        %659 = vmatpush1.msra.mxu0 0.0
        %660 = vmatprep.subr.mxu0 0.0
        %661 = vmatpush1.msra.mxu0 0.0
        %662 = vmatprep.mubr.f32.mxu0 0.0
        %v663 = vand.u32 %v155, 4294901760
        %664 = vmatmul.mubr.f32.gmra.mrb[0].mxu0 %v663
        %v665 = vpop.f32.mrb[0].mxu0
        %v666 = vadd.f32 %v559, %v665
        %v667 = vpop.f32.mrb[0].mxu0
        %668 = vmatprep.mubr.f32.mxu0 0.0
        %v669 = vand.u32 %v158, 4294901760
        %670 = vmatmul.mubr.f32.gmra.mrb[0].mxu0 %v669
        %v671 = vpop.f32.mrb[0].mxu0
        %v672 = vadd.f32 %v567, %v671
        %v673 = vpop.f32.mrb[0].mxu0
        %674 = vmatprep.mubr.f32.mxu0 0.0
        %v675 = vand.u32 %v161, 4294901760
        %676 = vmatmul.mubr.f32.gmra.mrb[0].mxu0 %v675
        %v677 = vpop.f32.mrb[0].mxu0
        %v678 = vadd.f32 %v575, %v677
        %v679 = vpop.f32.mrb[0].mxu0
        %680 = vmatprep.mubr.f32.mxu0 0.0
        %v681 = vand.u32 %v164, 4294901760
        %682 = vmatmul.mubr.f32.gmra.mrb[0].mxu0 %v681
        %v683 = vpop.f32.mrb[0].mxu0
        %v684 = vadd.f32 %v583, %v683
        %v685 = vpop.f32.mrb[0].mxu0
        %686 = vdwg.mxu0
        %687 = vmatprep.subr.mxu0 0.0
        %v688 = vand.u32 %v149, 4294901760
        %689 = vmatpush1.msra.mxu0 %v688
        %690 = vmatprep.subr.mxu0 0.0
        %v691 = vand.u32 %v150, 4294901760
        %692 = vmatpush1.msra.mxu0 %v691
        %693 = vmatprep.subr.mxu0 0.0
        %v694 = vand.u32 %v151, 4294901760
        %695 = vmatpush1.msra.mxu0 %v694
        %696 = vmatprep.subr.mxu0 0.0
        %v697 = vand.u32 %v152, 4294901760
        %698 = vmatpush1.msra.mxu0 %v697
        %699 = vmatprep.subr.mxu0 0.0
        %700 = vmatpush1.msra.mxu0 0.0
        %701 = vmatprep.subr.mxu0 0.0
        %702 = vmatpush1.msra.mxu0 0.0
        %703 = vmatprep.subr.mxu0 0.0
        %704 = vmatpush1.msra.mxu0 0.0
        %705 = vmatprep.subr.mxu0 0.0
        %706 = vmatpush1.msra.mxu0 0.0
        %707 = vmatprep.subr.mxu0 0.0
        %708 = vmatpush1.msra.mxu0 0.0
        %709 = vmatprep.subr.mxu0 0.0
        %710 = vmatpush1.msra.mxu0 0.0
        %711 = vmatprep.subr.mxu0 0.0
        %712 = vmatpush1.msra.mxu0 0.0
        %713 = vmatprep.subr.mxu0 0.0
        %714 = vmatpush1.msra.mxu0 0.0
        %715 = vmatprep.subr.mxu0 0.0
        %716 = vmatpush1.msra.mxu0 0.0
        %717 = vmatprep.subr.mxu0 0.0
        %718 = vmatpush1.msra.mxu0 0.0
        %719 = vmatprep.subr.mxu0 0.0
        %720 = vmatpush1.msra.mxu0 0.0
        %721 = vmatprep.subr.mxu0 0.0
        %722 = vmatpush1.msra.mxu0 0.0
        %723 = vmatprep.subr.mxu0 0.0
        %724 = vmatpush1.msra.mxu0 0.0
        %725 = vmatprep.subr.mxu0 0.0
        %726 = vmatpush1.msra.mxu0 0.0
        %727 = vmatprep.subr.mxu0 0.0
        %728 = vmatpush1.msra.mxu0 0.0
        %729 = vmatprep.subr.mxu0 0.0
        %730 = vmatpush1.msra.mxu0 0.0
        %731 = vmatprep.subr.mxu0 0.0
        %732 = vmatpush1.msra.mxu0 0.0
        %733 = vmatprep.subr.mxu0 0.0
        %734 = vmatpush1.msra.mxu0 0.0
        %735 = vmatprep.subr.mxu0 0.0
        %736 = vmatpush1.msra.mxu0 0.0
        %737 = vmatprep.subr.mxu0 0.0
        %738 = vmatpush1.msra.mxu0 0.0
        %739 = vmatprep.subr.mxu0 0.0
        %740 = vmatpush1.msra.mxu0 0.0
        %741 = vmatprep.subr.mxu0 0.0
        %742 = vmatpush1.msra.mxu0 0.0
        %743 = vmatprep.subr.mxu0 0.0
        %744 = vmatpush1.msra.mxu0 0.0
        %745 = vmatprep.subr.mxu0 0.0
        %746 = vmatpush1.msra.mxu0 0.0
        %747 = vmatprep.subr.mxu0 0.0
        %748 = vmatpush1.msra.mxu0 0.0
        %749 = vmatprep.subr.mxu0 0.0
        %750 = vmatpush1.msra.mxu0 0.0
        %751 = vmatprep.subr.mxu0 0.0
        %752 = vmatpush1.msra.mxu0 0.0
        %753 = vmatprep.subr.mxu0 0.0
        %754 = vmatpush1.msra.mxu0 0.0
        %755 = vmatprep.mubr.f32.mxu0 0.0
        %v756 = vand.u32 %v155, 4294901760
        %757 = vmatmul.mubr.f32.gmra.mrb[0].mxu0 %v756
        %v758 = vpop.f32.mrb[0].mxu0
        %v759 = vadd.f32 %v666, %v758
        %v760 = vpop.f32.mrb[0].mxu0
        %761 = vmatprep.mubr.f32.mxu0 0.0
        %v762 = vand.u32 %v158, 4294901760
        %763 = vmatmul.mubr.f32.gmra.mrb[0].mxu0 %v762
        %v764 = vpop.f32.mrb[0].mxu0
        %v765 = vadd.f32 %v672, %v764
        %v766 = vpop.f32.mrb[0].mxu0
        %767 = vmatprep.mubr.f32.mxu0 0.0
        %v768 = vand.u32 %v161, 4294901760
        %769 = vmatmul.mubr.f32.gmra.mrb[0].mxu0 %v768
        %v770 = vpop.f32.mrb[0].mxu0
        %v771 = vadd.f32 %v678, %v770
        %v772 = vpop.f32.mrb[0].mxu0
        %773 = vmatprep.mubr.f32.mxu0 0.0
        %v774 = vand.u32 %v164, 4294901760
        %775 = vmatmul.mubr.f32.gmra.mrb[0].mxu0 %v774
        %v776 = vpop.f32.mrb[0].mxu0
        %v777 = vadd.f32 %v684, %v776
        %v778 = vpop.f32.mrb[0].mxu0
        %779 = vdwg.mxu0
        %780 = vst [vmem:[%s137] sm:$0xff] %v759
        %781 = vst [vmem:[%s137 + $0x8] sm:$0xff] %v765
        %782 = vst [vmem:[%s137 + $0x10] sm:$0xff] %v771
        %783 = vst [vmem:[%s137 + $0x18] sm:$0xff] %v777
        %s784 = sand.u32 %s71, 1
        %s785 = scalar_lea.sflag [#allocation3], %s784
        %s786 = sand.u32 %s71, 1
        %s787 = smul.addr %s786, 32
        %s788 = scalar_lea.vmem [#allocation2], %s787
        // Predicated region
        $region29: #{tpu_custom_call.1} parent=27 // pred_check
          %p789 = pneg %p81
        $region30: #{tpu_custom_call.1} parent=27 // pred_check_branch
          %791 = sbr.rel (%p789) target = $region32
        $region31: #{tpu_custom_call.1} parent=27 // pred_region
          %s792 = smul.u32 4, %s16
          %s794 = ssub.s32 512, 512
          %795 = vsyncadd %s785, %s794
          %s796 = smul.addr %s792, 128
          %s797 = scalar_lea.hbm %s2, %s796
          %s798 = sshll.u32 %s788, 4
          %s799 = int_to_ptr.vmem [resolvable:$true] %s798
          %804 = dma.vmem_to_hbm [thread:$0]  %s799, 512, %s797, %s785, 128, 128, 8
        $region32: #{tpu_custom_call.1} parent=27 // pred_fallthru
          _
      $region28: #{tpu_custom_call.1} parent=5 // pred_fallthru
        _
      %p805 = scmp.le.s32.totalorder 2, %s11
      // Predicated region
      $region33: #{tpu_custom_call.1} parent=5 // pred_check
        %p806 = pneg %p805
      $region34: #{tpu_custom_call.1} parent=5 // pred_check_branch
        %808 = sbr.rel (%p806) target = $region36
      $region35: #{tpu_custom_call.1} parent=5 // pred_region
        %s809 = ssub.s32 %s11, 2
        // Predicated region
        $region37: #{tpu_custom_call.1} parent=35 // pred_check
          %p810 = pneg %p87
        $region38: #{tpu_custom_call.1} parent=35 // pred_check_branch
          %812 = sbr.rel (%p810) target = $region40
        $region39: #{tpu_custom_call.1} parent=35 // pred_region
          %s813 = sand.u32 %s72, 1
          %s814 = scalar_lea.sflag [#allocation3], %s813
          %s815 = sand.u32 %s72, 1
          %s816 = smul.addr %s815, 32
          %s817 = scalar_lea.vmem [#allocation2], %s816
          %818 = dma.done %s814, 512
        $region40: #{tpu_custom_call.1} parent=35 // pred_fallthru
          _
      $region36: #{tpu_custom_call.1} parent=5 // pred_fallthru
        _
    $region6: #{tpu_custom_call.1} parent=1 // loop_footer
      %s15 = sadd.s32 1, %s11
    $region7: #{tpu_custom_call.1} parent=1 // loop_footer_branch
      %10 = sbr.rel target = $region3
    $region8: #{tpu_custom_call.1} parent=1 // loop_exit
      _
    %819 = vsyncpa [#allocation3], 1
    %s820 = scalar_lea.sflag [#allocation3], 1
    %821 = vsyncpa %s820, 1

</llo_original>
